<compile_context>
chip_gen: v7x
topology: tpu7x:2x2x1
jax: 0.10.0
libtpu: 0.0.40
codegen_flags: <defaults>
</compile_context>

<pallas_src>
import jax
import jax.numpy as jnp
from jax.experimental import pallas as pl
from jax.experimental.pallas import tpu as pltpu


def _block_linear_packed_kernel(x_ref, w_ref, b_ref, o_ref):
    # x_ref: (bt, G*in_dim)          packed activations (batch tile, group chunk)
    # w_ref: (G*in_dim, G*out_dim)   block-diagonal weight for this group chunk
    # b_ref: (1, G*out_dim)          packed bias (f32)
    # o_ref: (bt, G*out_dim)         lane-dense output slab
    y = jnp.dot(x_ref[...], w_ref[...], preferred_element_type=jnp.float32)
    o_ref[...] = (y + b_ref[...]).astype(o_ref.dtype)


def _pick_groups_per_step(nblocks, in_dim, out_dim):
    """Pick a divisor G of nblocks so K=G*in is ~128-256 and N=G*out >= 128 (lane-dense
    stores), penalizing the quadratic (G*in)x(G*out) block-diagonal weight slab."""
    best_g, best_cost = nblocks, None
    for g in range(1, nblocks + 1):
        if nblocks % g:
            continue
        K, N = g * in_dim, g * out_dim
        nsteps = nblocks // g
        # (8,128) lane rule: packed-slab blocks must be 128-aligned unless full-extent.
        if nsteps > 1 and (K % 128 or N % 128):
            continue
        cost = 0.0
        cost += 0.0 if N >= 128 else (128 - N) * 32.0   # masked vst.msk stores: dominant
        cost += 0.0 if K >= 128 else (128 - K) * 4.0    # under-filled MXU contraction
        cost += max(0, K - 256) * 2.0                   # K past MXU depth buys nothing
        cost += (K * N) / 1024.0                        # quadratic weight bytes / wasted FLOPs
        if best_cost is None or cost < best_cost:
            best_g, best_cost = g, cost
    return best_g


def _pick_batch_tile(bs, sublane):
    """~512-row tiles (>=2, ideally >=4 pipeline / megacore steps) when the batch is big
    enough; tile must be a sublane multiple and divide bs."""
    if bs <= 512:
        return bs
    best = None
    for bt in range(sublane, min(bs, 512) + 1, sublane):
        if bs % bt == 0:
            best = bt
    return bs if best is None else best


def block_linear_conv(x, weight, bias, *, groups_per_step=None, batch_tile=None,
                      compute_dtype=jnp.bfloat16, packed_io=False, weight_buffers=1):
    """Grouped 1x1-conv block-linear (BlockLinear_conv forward).

    x:      (nblocks, bs, in_dim)     or (bs, nblocks*in_dim) when packed_io=True
    weight: (nblocks, in_dim, out_dim)
    bias:   (nblocks, out_dim)
    returns (nblocks, bs, out_dim)    or (bs, nblocks*out_dim) when packed_io=True

    compute_dtype: dtype for x / W_bd fed to the MXU (accumulation stays f32).
    """
    nblocks, in_dim, out_dim = weight.shape
    if packed_io:
        bs = x.shape[0]
        assert x.shape == (bs, nblocks * in_dim), "packed x must be (bs, nblocks*in_dim)"
    else:
        assert x.shape[0] == nblocks and x.shape[2] == in_dim
        bs = x.shape[1]
    out_dtype = x.dtype
    cdt = jnp.dtype(compute_dtype) if compute_dtype is not None else jnp.dtype(out_dtype)
    cbytes = cdt.itemsize
    out_bytes = jnp.dtype(out_dtype).itemsize
    sublane = 8 * (4 // cbytes)  # 8 rows/f32, 16 rows/bf16 per packed sublane tile

    # ---- tiling choices --------------------------------------------------------------
    G = (_pick_groups_per_step(nblocks, in_dim, out_dim)
         if groups_per_step is None else groups_per_step)
    assert nblocks % G == 0, "groups_per_step must divide num_blocks"
    nsteps = nblocks // G
    K, N = G * in_dim, G * out_dim
    if nsteps > 1:
        assert K % 128 == 0 and N % 128 == 0, (
            "with multiple group chunks, G*in_dim and G*out_dim must be multiples of 128")
    bt = _pick_batch_tile(bs, sublane) if batch_tile is None else batch_tile
    assert bs % bt == 0, "batch_tile must divide bs"
    if bt < bs:
        assert bt % sublane == 0, (
            f"batch_tile must be a multiple of {sublane} for dtype {cdt}")
    # NOTE: when nsteps == 1 and N < 128 (tiny configs like the demo below), output
    # stores are masked — correct but slow; at production sizes the picker avoids it.

    # ---- wrapper-side packing (same transpose+reshape the PyTorch module does) --------
    if packed_io:
        x_packed = x.astype(cdt)
    else:
        x_packed = jnp.transpose(x, (1, 0, 2)).reshape(bs, nblocks * in_dim).astype(cdt)

    # Per-chunk block-diagonal weight via static-slice scatter (no eye-einsum; O(G*in*out)
    # writes, constant-folds for static inference weights).
    wg = weight.reshape(nsteps, G, in_dim, out_dim).astype(cdt)
    w_bd = jnp.zeros((nsteps, K, N), dtype=cdt)
    for g in range(G):
        w_bd = w_bd.at[:, g * in_dim:(g + 1) * in_dim,
                       g * out_dim:(g + 1) * out_dim].set(wg[:, g])

    # Packed bias stays f32 (bias add and cast are f32 on the VPU, v5e-safe).
    b_packed = bias.reshape(nsteps, 1, N).astype(jnp.float32)

    # Group-chunk axis outermost (weight slab changes only nsteps times); batch axis is
    # the inner "parallel" axis the v7x megacore split lands on.
    grid = (nsteps, bs // bt)

    # ---- explicit VMEM budget + cost estimate ------------------------------------------
    wbuf = 1 if weight_buffers is None else max(int(weight_buffers), 1)
    vmem_bytes = (2 * bt * K * cbytes            # x tile (double-buffered)
                  + 2 * bt * N * out_bytes       # out tile (double-buffered)
                  + wbuf * K * N * cbytes        # weight slab (single-buffered if wbuf==1)
                  + 2 * N * 4)                   # bias
    vmem_limit = min(int(1.5 * vmem_bytes) + (16 << 20), 128 << 20)

    cost = pl.CostEstimate(
        flops=2 * bs * nblocks * in_dim * out_dim,     # useful FLOPs only
        transcendentals=0,
        bytes_accessed=int(x_packed.size * cbytes + w_bd.size * cbytes
                           + b_packed.size * 4 + bs * nblocks * out_dim * out_bytes),
    )

    def _call(w_pipeline_mode):
        w_kwargs = {} if w_pipeline_mode is None else {"pipeline_mode": w_pipeline_mode}
        return pl.pallas_call(
            _block_linear_packed_kernel,
            out_shape=jax.ShapeDtypeStruct((bs, nblocks * out_dim), out_dtype),
            grid_spec=pl.GridSpec(
                grid=grid,
                in_specs=[
                    pl.BlockSpec((bt, K), lambda gi, bi: (bi, gi)),
                    pl.BlockSpec((pl.Squeezed(), K, N), lambda gi, bi: (gi, 0, 0),
                                 **w_kwargs),
                    pl.BlockSpec((pl.Squeezed(), 1, N), lambda gi, bi: (gi, 0, 0)),
                ],
                out_specs=pl.BlockSpec((bt, N), lambda gi, bi: (bi, gi)),
            ),
            compiler_params=pltpu.CompilerParams(
                dimension_semantics=("parallel", "parallel"),
                vmem_limit_bytes=vmem_limit,
            ),
            cost_estimate=cost,
        )(x_packed, w_bd, b_packed)

    if weight_buffers is None:
        y_packed = _call(None)
    else:
        try:
            # Weight slab is reused across all batch steps -> single-buffer it (halves
            # its VMEM with zero lost overlap; matters most on v7x's 64 MiB).
            y_packed = _call(pl.Buffered(wbuf))
        except Exception:
            # Fallback if this JAX build rejects the requested buffer count.
            y_packed = _call(None)

    if packed_io:
        return y_packed
    # Unpack: (bs, nblocks*out) -> (nblocks, bs, out) (same reshape/transpose as the module).
    return jnp.transpose(y_packed.reshape(bs, nblocks, out_dim), (1, 0, 2))


if __name__ == "__main__":
    # Small shapes consistent with the module's forward.
    num_blocks = 4
    bs = 8
    input_block_dim = 32
    output_block_dim = 16

    key = jax.random.PRNGKey(0)
    kx, kw, kb = jax.random.split(key, 3)

    # Input as in PyTorch forward: (num_blocks, bs, input_block_dim)
    x = jax.random.normal(kx, (num_blocks, bs, input_block_dim), dtype=jnp.float32)

    # Deterministic synthetic conv parameters.
    # Conv2d weight shape: (out_dim*nblocks, in_dim, 1, 1) -> per-block W[g]: (out_dim, in_dim)
    conv_weight = (
        jax.random.normal(
            kw, (num_blocks * output_block_dim, input_block_dim, 1, 1), dtype=jnp.float32
        ) * 0.1
    )
    conv_bias = jax.random.normal(kb, (num_blocks * output_block_dim,), dtype=jnp.float32) * 0.1

    # Glue (plain JAX): reshape conv params into per-block matmul form.
    w_blocks = conv_weight[:, :, 0, 0].reshape(num_blocks, output_block_dim, input_block_dim)
    w_blocks = jnp.transpose(w_blocks, (0, 2, 1))  # (nblocks, in_dim, out_dim)
    b_blocks = conv_bias.reshape(num_blocks, output_block_dim)

    # Reference (pure JAX) replicating the PyTorch grouped 1x1 conv semantics.
    y_ref = jnp.einsum("gbi,gio->gbo", x, w_blocks) + b_blocks[:, None, :]

    # f32-compute run (exact path).
    y_f32 = jax.block_until_ready(
        block_linear_conv(x, w_blocks, b_blocks, compute_dtype=jnp.float32))
    assert y_f32.shape == (num_blocks, bs, output_block_dim)
    assert jnp.allclose(y_f32, y_ref, atol=1e-4, rtol=1e-4), "f32 mismatch vs reference"

    # Default bf16-compute / f32-accumulate run (recommended production path).
    y_bf16 = jax.block_until_ready(block_linear_conv(x, w_blocks, b_blocks))
    assert jnp.allclose(y_bf16, y_ref, atol=3e-2, rtol=3e-2), "bf16 mismatch vs reference"

    # Packed-I/O path (caller keeps the (bs, nblocks*dim) layout; no wrapper round-trips).
    x_packed = jnp.transpose(x, (1, 0, 2)).reshape(bs, num_blocks * input_block_dim)
    y_pk = jax.block_until_ready(
        block_linear_conv(x_packed, w_blocks, b_blocks,
                          compute_dtype=jnp.float32, packed_io=True))
    y_pk = jnp.transpose(y_pk.reshape(bs, num_blocks, output_block_dim), (1, 0, 2))
    assert jnp.allclose(y_pk, y_ref, atol=1e-4, rtol=1e-4), "packed-io mismatch vs reference"

    print("KERNEL_OK")
</pallas_src>

<mosaic_0001>
module attributes {stable_mosaic.version = 11 : i64} {
  func.func @_block_linear_packed_kernel(%arg0: i32, %arg1: i32, %arg2: memref<8x128xf32, #tpu.memory_space<vmem>>, %arg3: memref<1x128x64xf32, #tpu.memory_space<vmem>>, %arg4: memref<1x1x64xf32, #tpu.memory_space<vmem>>, %arg5: memref<8x64xf32, #tpu.memory_space<vmem>>) attributes {dimension_semantics = [#tpu.dimension_semantics<parallel>, #tpu.dimension_semantics<parallel>], iteration_bounds = array<i64: 1, 1>, scalar_prefetch = 0 : i64, scratch_operands = 0 : i64, tpu.core_type = #tpu.core_type<tc>, window_params = [{transform_indices = @transform_0, window_bounds = array<i64: 8, 128>}, {pipeline_mode = #tpu.pipeline_mode<synchronous>, transform_indices = @transform_1, window_bounds = array<i64: 1, 128, 64>}, {transform_indices = @transform_2, window_bounds = array<i64: 1, 1, 64>}, {transform_indices = @transform_3, window_bounds = array<i64: 8, 64>}]} {
    %c0 = arith.constant 0 : index
    %c0_0 = arith.constant 0 : index
    %0 = vector.load %arg2[%c0, %c0_0] : memref<8x128xf32, #tpu.memory_space<vmem>>, vector<8x128xf32>
    %c0_1 = arith.constant 0 : index
    %c0_2 = arith.constant 0 : index
    %c0_3 = arith.constant 0 : index
    %1 = vector.load %arg3[%c0_1, %c0_2, %c0_3] : memref<1x128x64xf32, #tpu.memory_space<vmem>>, vector<1x128x64xf32>
    %2 = vector.shape_cast %1 : vector<1x128x64xf32> to vector<128x64xf32>
    %cst = arith.constant dense<0.000000e+00> : vector<8x64xf32>
    %3 = tpu.matmul %0, %2, %cst {dimension_numbers = #tpu.dot_dimension_numbers<[1], [0], [0], [1], [0, 0, 1, 1], [], []>} : vector<8x128xf32>, vector<128x64xf32>, vector<8x64xf32> -> vector<8x64xf32>
    %c0_4 = arith.constant 0 : index
    %c0_5 = arith.constant 0 : index
    %c0_6 = arith.constant 0 : index
    %4 = vector.load %arg4[%c0_4, %c0_5, %c0_6] : memref<1x1x64xf32, #tpu.memory_space<vmem>>, vector<1x1x64xf32>
    %5 = vector.shape_cast %4 : vector<1x1x64xf32> to vector<1x64xf32>
    %6 = vector.broadcast %5 : vector<1x64xf32> to vector<8x64xf32>
    %7 = arith.addf %3, %6 : vector<8x64xf32>
    %c0_7 = arith.constant 0 : index
    %c0_8 = arith.constant 0 : index
    %8 = vector.load %arg5[%c0_7, %c0_8] : memref<8x64xf32, #tpu.memory_space<vmem>>, vector<8x64xf32>
    tpu.vector_store %arg5[%c0_7, %c0_8], %7 {strides = array<i32>} : memref<8x64xf32, #tpu.memory_space<vmem>>, vector<8x64xf32>,
    return
  }
  func.func @transform_0(%arg0: i32, %arg1: i32) -> (i32, i32) {
    %c0_i32 = arith.constant 0 : i32
    return %arg1, %arg0 : i32, i32
  }
  func.func @transform_1(%arg0: i32, %arg1: i32) -> (i32, i32, i32) {
    %c0_i32 = arith.constant 0 : i32
    %c0_i32_0 = arith.constant 0 : i32
    %c0_i32_1 = arith.constant 0 : i32
    return %arg0, %c0_i32, %c0_i32_0 : i32, i32, i32
  }
  func.func @transform_2(%arg0: i32, %arg1: i32) -> (i32, i32, i32) {
    %c0_i32 = arith.constant 0 : i32
    %c0_i32_0 = arith.constant 0 : i32
    %c0_i32_1 = arith.constant 0 : i32
    return %arg0, %c0_i32, %c0_i32_0 : i32, i32, i32
  }
  func.func @transform_3(%arg0: i32, %arg1: i32) -> (i32, i32) {
    %c0_i32 = arith.constant 0 : i32
    return %arg1, %arg0 : i32, i32
  }
}

module attributes {stable_mosaic.version = 11 : i64} {
  func.func @_block_linear_packed_kernel(%arg0: i32, %arg1: i32, %arg2: memref<8x128xf32, #tpu.memory_space<vmem>>, %arg3: memref<1x128x64xf32, #tpu.memory_space<vmem>>, %arg4: memref<1x1x64xf32, #tpu.memory_space<vmem>>, %arg5: memref<8x64xf32, #tpu.memory_space<vmem>>) attributes {dimension_semantics = [#tpu.dimension_semantics<parallel>, #tpu.dimension_semantics<parallel>], iteration_bounds = array<i64: 1, 1>, scalar_prefetch = 0 : i64, scratch_operands = 0 : i64, tpu.core_type = #tpu.core_type<tc>, window_params = [{transform_indices = @transform_0, window_bounds = array<i64: 8, 128>}, {transform_indices = @transform_1, window_bounds = array<i64: 1, 128, 64>}, {transform_indices = @transform_2, window_bounds = array<i64: 1, 1, 64>}, {transform_indices = @transform_3, window_bounds = array<i64: 8, 64>}]} {
    %c0 = arith.constant 0 : index
    %c0_0 = arith.constant 0 : index
    %0 = vector.load %arg2[%c0, %c0_0] : memref<8x128xf32, #tpu.memory_space<vmem>>, vector<8x128xf32>
    %c0_1 = arith.constant 0 : index
    %c0_2 = arith.constant 0 : index
    %c0_3 = arith.constant 0 : index
    %1 = vector.load %arg3[%c0_1, %c0_2, %c0_3] : memref<1x128x64xf32, #tpu.memory_space<vmem>>, vector<1x128x64xf32>
    %2 = vector.shape_cast %1 : vector<1x128x64xf32> to vector<128x64xf32>
    %cst = arith.constant dense<0.000000e+00> : vector<8x64xf32>
    %3 = tpu.matmul %0, %2, %cst {dimension_numbers = #tpu.dot_dimension_numbers<[1], [0], [0], [1], [0, 0, 1, 1], [], []>} : vector<8x128xf32>, vector<128x64xf32>, vector<8x64xf32> -> vector<8x64xf32>
    %c0_4 = arith.constant 0 : index
    %c0_5 = arith.constant 0 : index
    %c0_6 = arith.constant 0 : index
    %4 = vector.load %arg4[%c0_4, %c0_5, %c0_6] : memref<1x1x64xf32, #tpu.memory_space<vmem>>, vector<1x1x64xf32>
    %5 = vector.shape_cast %4 : vector<1x1x64xf32> to vector<1x64xf32>
    %6 = vector.broadcast %5 : vector<1x64xf32> to vector<8x64xf32>
    %7 = arith.addf %3, %6 : vector<8x64xf32>
    %c0_7 = arith.constant 0 : index
    %c0_8 = arith.constant 0 : index
    %8 = vector.load %arg5[%c0_7, %c0_8] : memref<8x64xf32, #tpu.memory_space<vmem>>, vector<8x64xf32>
    tpu.vector_store %arg5[%c0_7, %c0_8], %7 {strides = array<i32>} : memref<8x64xf32, #tpu.memory_space<vmem>>, vector<8x64xf32>,
    return
  }
  func.func @transform_0(%arg0: i32, %arg1: i32) -> (i32, i32) {
    %c0_i32 = arith.constant 0 : i32
    return %arg1, %arg0 : i32, i32
  }
  func.func @transform_1(%arg0: i32, %arg1: i32) -> (i32, i32, i32) {
    %c0_i32 = arith.constant 0 : i32
    %c0_i32_0 = arith.constant 0 : i32
    %c0_i32_1 = arith.constant 0 : i32
    return %arg0, %c0_i32, %c0_i32_0 : i32, i32, i32
  }
  func.func @transform_2(%arg0: i32, %arg1: i32) -> (i32, i32, i32) {
    %c0_i32 = arith.constant 0 : i32
    %c0_i32_0 = arith.constant 0 : i32
    %c0_i32_1 = arith.constant 0 : i32
    return %arg0, %c0_i32, %c0_i32_0 : i32, i32, i32
  }
  func.func @transform_3(%arg0: i32, %arg1: i32) -> (i32, i32) {
    %c0_i32 = arith.constant 0 : i32
    return %arg1, %arg0 : i32, i32
  }
}

</mosaic_0001>

<llo_original>
// kernel: tpu_custom_call.1
$region0: #{tpu_custom_call.1}
  #allocation0 [shape = 'u32[]', space=smem, size = 0x4, offset = 0x4, fixed_abs, tag = 'smem constant byte address 0x4 - core index']
  #allocation1 [shape = 'u32[144,128]{1,0:T(1,128)}', space=vmem, size = 0x12000, scoped, tag = 'internal scratch']
  %s0 = inlined_call_operand.vmem [shape: f32[8,128], index: 0, kind: input, shape index: {}]
  %s1 = inlined_call_operand.vmem [shape: f32[1,128,64], index: 1, kind: input, shape index: {}]
  %s2 = inlined_call_operand.vmem [shape: f32[1,1,64], index: 2, kind: input, shape index: {}]
  %s3 = inlined_call_operand.hbm [shape: f32[8,64], index: 3, kind: output, shape index: {}]
  %s4 = sld [smem:[#allocation0]]
  $region22: #{tpu_custom_call.1} parent=0
    _
  %s6 = ssub.s32 1, %s4
  %s7 = scalar_select 0, %s6, %s4
  $region1: #{tpu_custom_call.1} parent=0
    #allocation2 [shape = 'u8[4096]{0}', space=vmem, size = 0x1000, scoped, tag = 'output window, operand 0, single buffered']
    #allocation3 [shape = 's32[1]{0}', space=sflag, size = 0x4, scoped, tag = 'scoped memory for tpu_custom_call.1']
    %8 = vsyncpa [#allocation3], 0
    // Predicated region
    $region2: #{tpu_custom_call.1} parent=1 // pred_check
      _
    $region3: #{tpu_custom_call.1} parent=1 // pred_check_branch
      %10 = sbr.rel (0) target = $region5
    $region4: #{tpu_custom_call.1} parent=1 // pred_region
      _
    $region5: #{tpu_custom_call.1} parent=1 // pred_fallthru
      _
    // Predicated region
    $region6: #{tpu_custom_call.1} parent=1 // pred_check
      _
    $region7: #{tpu_custom_call.1} parent=1 // pred_check_branch
      %12 = sbr.rel (0) target = $region9
    $region8: #{tpu_custom_call.1} parent=1 // pred_region
      _
    $region9: #{tpu_custom_call.1} parent=1 // pred_fallthru
      _
    // Predicated region
    $region10: #{tpu_custom_call.1} parent=1 // pred_check
      _
    $region11: #{tpu_custom_call.1} parent=1 // pred_check_branch
      %14 = sbr.rel (0) target = $region13
    $region12: #{tpu_custom_call.1} parent=1 // pred_region
      _
    $region13: #{tpu_custom_call.1} parent=1 // pred_fallthru
      _
    %v15 = vld [vmem:[%s0] sm:$0xff]
    %v16 = vld [vmem:[%s1] sm:$0xff]
    %v17 = vld [vmem:[%s1 + $0x8] sm:$0xff]
    %v18 = vld [vmem:[%s1 + $0x10] sm:$0xff]
    %v19 = vld [vmem:[%s1 + $0x18] sm:$0xff]
    %v20 = vld [vmem:[%s1 + $0x20] sm:$0xff]
    %v21 = vld [vmem:[%s1 + $0x28] sm:$0xff]
    %v22 = vld [vmem:[%s1 + $0x30] sm:$0xff]
    %v23 = vld [vmem:[%s1 + $0x38] sm:$0xff]
    %v24 = vld [vmem:[%s1 + $0x40] sm:$0xff]
    %v25 = vld [vmem:[%s1 + $0x48] sm:$0xff]
    %v26 = vld [vmem:[%s1 + $0x50] sm:$0xff]
    %v27 = vld [vmem:[%s1 + $0x58] sm:$0xff]
    %v28 = vld [vmem:[%s1 + $0x60] sm:$0xff]
    %v29 = vld [vmem:[%s1 + $0x68] sm:$0xff]
    %v30 = vld [vmem:[%s1 + $0x70] sm:$0xff]
    %v31 = vld [vmem:[%s1 + $0x78] sm:$0xff]
    %v32 = vld [vmem:[%s2] sm:$0x1]
    %v34 = vlaneseq
    %v35 = vshrl.u32 %v34, 7
    %v36 = vsub.s32 0, %v35
    %v37 = vrot.slane %v32, %v36
    %39 = vmatprep.subr.mxu0 0.0
    %40 = vmatpush1.msra.mxu0 %v16
    %41 = vmatprep.subr.mxu0 0.0
    %42 = vmatpush1.msra.mxu0 %v17
    %43 = vmatprep.subr.mxu0 0.0
    %44 = vmatpush1.msra.mxu0 %v18
    %45 = vmatprep.subr.mxu0 0.0
    %46 = vmatpush1.msra.mxu0 %v19
    %47 = vmatprep.subr.mxu0 0.0
    %48 = vmatpush1.msra.mxu0 %v20
    %49 = vmatprep.subr.mxu0 0.0
    %50 = vmatpush1.msra.mxu0 %v21
    %51 = vmatprep.subr.mxu0 0.0
    %52 = vmatpush1.msra.mxu0 %v22
    %53 = vmatprep.subr.mxu0 0.0
    %54 = vmatpush1.msra.mxu0 %v23
    %55 = vmatprep.subr.mxu0 0.0
    %56 = vmatpush1.msra.mxu0 %v24
    %57 = vmatprep.subr.mxu0 0.0
    %58 = vmatpush1.msra.mxu0 %v25
    %59 = vmatprep.subr.mxu0 0.0
    %60 = vmatpush1.msra.mxu0 %v26
    %61 = vmatprep.subr.mxu0 0.0
    %62 = vmatpush1.msra.mxu0 %v27
    %63 = vmatprep.subr.mxu0 0.0
    %64 = vmatpush1.msra.mxu0 %v28
    %65 = vmatprep.subr.mxu0 0.0
    %66 = vmatpush1.msra.mxu0 %v29
    %67 = vmatprep.subr.mxu0 0.0
    %68 = vmatpush1.msra.mxu0 %v30
    %69 = vmatprep.subr.mxu0 0.0
    %70 = vmatpush1.msra.mxu0 %v31
    %71 = vmatprep.subr.mxu0 0.0
    %72 = vmatpush1.msra.mxu0 0.0
    %73 = vmatprep.subr.mxu0 0.0
    %74 = vmatpush1.msra.mxu0 0.0
    %75 = vmatprep.subr.mxu0 0.0
    %76 = vmatpush1.msra.mxu0 0.0
    %77 = vmatprep.subr.mxu0 0.0
    %78 = vmatpush1.msra.mxu0 0.0
    %79 = vmatprep.subr.mxu0 0.0
    %80 = vmatpush1.msra.mxu0 0.0
    %81 = vmatprep.subr.mxu0 0.0
    %82 = vmatpush1.msra.mxu0 0.0
    %83 = vmatprep.subr.mxu0 0.0
    %84 = vmatpush1.msra.mxu0 0.0
    %85 = vmatprep.subr.mxu0 0.0
    %86 = vmatpush1.msra.mxu0 0.0
    %87 = vmatprep.subr.mxu0 0.0
    %88 = vmatpush1.msra.mxu0 0.0
    %89 = vmatprep.subr.mxu0 0.0
    %90 = vmatpush1.msra.mxu0 0.0
    %91 = vmatprep.subr.mxu0 0.0
    %92 = vmatpush1.msra.mxu0 0.0
    %93 = vmatprep.subr.mxu0 0.0
    %94 = vmatpush1.msra.mxu0 0.0
    %95 = vmatprep.subr.mxu0 0.0
    %96 = vmatpush1.msra.mxu0 0.0
    %97 = vmatprep.subr.mxu0 0.0
    %98 = vmatpush1.msra.mxu0 0.0
    %99 = vmatprep.subr.mxu0 0.0
    %100 = vmatpush1.msra.mxu0 0.0
    %101 = vmatprep.subr.mxu0 0.0
    %102 = vmatpush1.msra.mxu0 0.0
    %103 = vmatprep.mubr.f32.mxu0 0.0
    %104 = vmatmul.mubr.f32.gmra.mrb[0].mxu0 %v15
    %v105 = vpop.f32.mrb[0].mxu0
    %v106 = vadd.f32 %v37, %v105
    %v107 = vpop.f32.mrb[0].mxu0
    %108 = vdwg.mxu0
    %vm109 = vcmask 523264
    %110 = vst.msk [vmem:[#allocation2] sm:$0xff] %vm109, %v106
    // Predicated region
    $region14: #{tpu_custom_call.1} parent=1 // pred_check
      _
    $region15: #{tpu_custom_call.1} parent=1 // pred_check_branch
      %112 = sbr.rel (0) target = $region17
    $region16: #{tpu_custom_call.1} parent=1 // pred_region
      %s114 = ssub.s32 128, 128
      %115 = vsyncadd [#allocation3], %s114
      %s117 = sshll.u32 [#allocation2], 4
      %s118 = int_to_ptr.vmem [resolvable:$true] %s117
      %120 = dma.vmem_to_hbm [thread:$0]  %s118, 128, %s3, [#allocation3]
    $region17: #{tpu_custom_call.1} parent=1 // pred_fallthru
      _
    // Predicated region
    $region18: #{tpu_custom_call.1} parent=1 // pred_check
      _
    $region19: #{tpu_custom_call.1} parent=1 // pred_check_branch
      %122 = sbr.rel (0) target = $region21
    $region20: #{tpu_custom_call.1} parent=1 // pred_region
      %123 = dma.done [#allocation3], 128
    $region21: #{tpu_custom_call.1} parent=1 // pred_fallthru
      _
    %124 = vsyncpa [#allocation3], 1

// kernel: tpu_custom_call.1
$region0: #{tpu_custom_call.1}
  #allocation0 [shape = 'u32[]', space=smem, size = 0x4, offset = 0x4, fixed_abs, tag = 'smem constant byte address 0x4 - core index']
  #allocation1 [shape = 'u32[144,128]{1,0:T(1,128)}', space=vmem, size = 0x12000, scoped, tag = 'internal scratch']
  %s0 = inlined_call_operand.vmem [shape: f32[8,128], index: 0, kind: input, shape index: {}]
  %s1 = inlined_call_operand.vmem [shape: f32[1,128,64], index: 1, kind: input, shape index: {}]
  %s2 = inlined_call_operand.vmem [shape: f32[1,1,64], index: 2, kind: input, shape index: {}]
  %s3 = inlined_call_operand.hbm [shape: f32[8,64], index: 3, kind: output, shape index: {}]
  %s4 = sld [smem:[#allocation0]]
  $region22: #{tpu_custom_call.1} parent=0
    _
  %s6 = ssub.s32 1, %s4
  %s7 = scalar_select 0, %s6, %s4
  $region1: #{tpu_custom_call.1} parent=0
    #allocation2 [shape = 'u8[4096]{0}', space=vmem, size = 0x1000, scoped, tag = 'output window, operand 0, single buffered']
    #allocation3 [shape = 's32[1]{0}', space=sflag, size = 0x4, scoped, tag = 'scoped memory for tpu_custom_call.1']
    %8 = vsyncpa [#allocation3], 0
    // Predicated region
    $region2: #{tpu_custom_call.1} parent=1 // pred_check
      _
    $region3: #{tpu_custom_call.1} parent=1 // pred_check_branch
      %10 = sbr.rel (0) target = $region5
    $region4: #{tpu_custom_call.1} parent=1 // pred_region
      _
    $region5: #{tpu_custom_call.1} parent=1 // pred_fallthru
      _
    // Predicated region
    $region6: #{tpu_custom_call.1} parent=1 // pred_check
      _
    $region7: #{tpu_custom_call.1} parent=1 // pred_check_branch
      %12 = sbr.rel (0) target = $region9
    $region8: #{tpu_custom_call.1} parent=1 // pred_region
      _
    $region9: #{tpu_custom_call.1} parent=1 // pred_fallthru
      _
    // Predicated region
    $region10: #{tpu_custom_call.1} parent=1 // pred_check
      _
    $region11: #{tpu_custom_call.1} parent=1 // pred_check_branch
      %14 = sbr.rel (0) target = $region13
    $region12: #{tpu_custom_call.1} parent=1 // pred_region
      _
    $region13: #{tpu_custom_call.1} parent=1 // pred_fallthru
      _
    %v15 = vld [vmem:[%s0] sm:$0xff]
    %v16 = vld [vmem:[%s1] sm:$0xff]
    %v17 = vld [vmem:[%s1 + $0x8] sm:$0xff]
    %v18 = vld [vmem:[%s1 + $0x10] sm:$0xff]
    %v19 = vld [vmem:[%s1 + $0x18] sm:$0xff]
    %v20 = vld [vmem:[%s1 + $0x20] sm:$0xff]
    %v21 = vld [vmem:[%s1 + $0x28] sm:$0xff]
    %v22 = vld [vmem:[%s1 + $0x30] sm:$0xff]
    %v23 = vld [vmem:[%s1 + $0x38] sm:$0xff]
    %v24 = vld [vmem:[%s1 + $0x40] sm:$0xff]
    %v25 = vld [vmem:[%s1 + $0x48] sm:$0xff]
    %v26 = vld [vmem:[%s1 + $0x50] sm:$0xff]
    %v27 = vld [vmem:[%s1 + $0x58] sm:$0xff]
    %v28 = vld [vmem:[%s1 + $0x60] sm:$0xff]
    %v29 = vld [vmem:[%s1 + $0x68] sm:$0xff]
    %v30 = vld [vmem:[%s1 + $0x70] sm:$0xff]
    %v31 = vld [vmem:[%s1 + $0x78] sm:$0xff]
    %v32 = vld [vmem:[%s2] sm:$0x1]
    %v34 = vlaneseq
    %v35 = vshrl.u32 %v34, 7
    %v36 = vsub.s32 0, %v35
    %v37 = vrot.slane %v32, %v36
    %39 = vmatprep.subr.mxu0 0.0
    %40 = vmatpush1.msra.mxu0 %v16
    %41 = vmatprep.subr.mxu0 0.0
    %42 = vmatpush1.msra.mxu0 %v17
    %43 = vmatprep.subr.mxu0 0.0
    %44 = vmatpush1.msra.mxu0 %v18
    %45 = vmatprep.subr.mxu0 0.0
    %46 = vmatpush1.msra.mxu0 %v19
    %47 = vmatprep.subr.mxu0 0.0
    %48 = vmatpush1.msra.mxu0 %v20
    %49 = vmatprep.subr.mxu0 0.0
    %50 = vmatpush1.msra.mxu0 %v21
    %51 = vmatprep.subr.mxu0 0.0
    %52 = vmatpush1.msra.mxu0 %v22
    %53 = vmatprep.subr.mxu0 0.0
    %54 = vmatpush1.msra.mxu0 %v23
    %55 = vmatprep.subr.mxu0 0.0
    %56 = vmatpush1.msra.mxu0 %v24
    %57 = vmatprep.subr.mxu0 0.0
    %58 = vmatpush1.msra.mxu0 %v25
    %59 = vmatprep.subr.mxu0 0.0
    %60 = vmatpush1.msra.mxu0 %v26
    %61 = vmatprep.subr.mxu0 0.0
    %62 = vmatpush1.msra.mxu0 %v27
    %63 = vmatprep.subr.mxu0 0.0
    %64 = vmatpush1.msra.mxu0 %v28
    %65 = vmatprep.subr.mxu0 0.0
    %66 = vmatpush1.msra.mxu0 %v29
    %67 = vmatprep.subr.mxu0 0.0
    %68 = vmatpush1.msra.mxu0 %v30
    %69 = vmatprep.subr.mxu0 0.0
    %70 = vmatpush1.msra.mxu0 %v31
    %71 = vmatprep.subr.mxu0 0.0
    %72 = vmatpush1.msra.mxu0 0.0
    %73 = vmatprep.subr.mxu0 0.0
    %74 = vmatpush1.msra.mxu0 0.0
    %75 = vmatprep.subr.mxu0 0.0
    %76 = vmatpush1.msra.mxu0 0.0
    %77 = vmatprep.subr.mxu0 0.0
    %78 = vmatpush1.msra.mxu0 0.0
    %79 = vmatprep.subr.mxu0 0.0
    %80 = vmatpush1.msra.mxu0 0.0
    %81 = vmatprep.subr.mxu0 0.0
    %82 = vmatpush1.msra.mxu0 0.0
    %83 = vmatprep.subr.mxu0 0.0
    %84 = vmatpush1.msra.mxu0 0.0
    %85 = vmatprep.subr.mxu0 0.0
    %86 = vmatpush1.msra.mxu0 0.0
    %87 = vmatprep.subr.mxu0 0.0
    %88 = vmatpush1.msra.mxu0 0.0
    %89 = vmatprep.subr.mxu0 0.0
    %90 = vmatpush1.msra.mxu0 0.0
    %91 = vmatprep.subr.mxu0 0.0
    %92 = vmatpush1.msra.mxu0 0.0
    %93 = vmatprep.subr.mxu0 0.0
    %94 = vmatpush1.msra.mxu0 0.0
    %95 = vmatprep.subr.mxu0 0.0
    %96 = vmatpush1.msra.mxu0 0.0
    %97 = vmatprep.subr.mxu0 0.0
    %98 = vmatpush1.msra.mxu0 0.0
    %99 = vmatprep.subr.mxu0 0.0
    %100 = vmatpush1.msra.mxu0 0.0
    %101 = vmatprep.subr.mxu0 0.0
    %102 = vmatpush1.msra.mxu0 0.0
    %103 = vmatprep.mubr.f32.mxu0 0.0
    %104 = vmatmul.mubr.f32.gmra.mrb[0].mxu0 %v15
    %v105 = vpop.f32.mrb[0].mxu0
    %v106 = vadd.f32 %v37, %v105
    %v107 = vpop.f32.mrb[0].mxu0
    %108 = vdwg.mxu0
    %vm109 = vcmask 523264
    %110 = vst.msk [vmem:[#allocation2] sm:$0xff] %vm109, %v106
    // Predicated region
    $region14: #{tpu_custom_call.1} parent=1 // pred_check
      _
    $region15: #{tpu_custom_call.1} parent=1 // pred_check_branch
      %112 = sbr.rel (0) target = $region17
    $region16: #{tpu_custom_call.1} parent=1 // pred_region
      %s114 = ssub.s32 128, 128
      %115 = vsyncadd [#allocation3], %s114
      %s117 = sshll.u32 [#allocation2], 4
      %s118 = int_to_ptr.vmem [resolvable:$true] %s117
      %120 = dma.vmem_to_hbm [thread:$0]  %s118, 128, %s3, [#allocation3]
    $region17: #{tpu_custom_call.1} parent=1 // pred_fallthru
      _
    // Predicated region
    $region18: #{tpu_custom_call.1} parent=1 // pred_check
      _
    $region19: #{tpu_custom_call.1} parent=1 // pred_check_branch
      %122 = sbr.rel (0) target = $region21
    $region20: #{tpu_custom_call.1} parent=1 // pred_region
      %123 = dma.done [#allocation3], 128
    $region21: #{tpu_custom_call.1} parent=1 // pred_fallthru
      _
    %124 = vsyncpa [#allocation3], 1

</llo_original>
